<compile_context>
chip_gen: v5e
topology: v5e:2x2
jax: 0.10.0
libtpu: 0.0.40
codegen_flags: <defaults>
</compile_context>

<pallas_src>
import functools

import jax
import jax.numpy as jnp
import numpy as np
from jax.experimental import pallas as pl
from jax.experimental.pallas import tpu as pltpu


def _ce_partial_kernel(logits_ref, tgt_ref, w_ref, numer_ref, denom_ref,
                       *, n_rows, tile_rows):
    i = pl.program_id(0)

    x = logits_ref[...].astype(jnp.float32)          # (TR, C)
    t = tgt_ref[...]                                  # (TR, 1) int32
    w = w_ref[...]                                    # (1, C)  f32

    # Validity of each row (last tile of the grid may run past N).
    row = jax.lax.broadcasted_iota(jnp.int32, t.shape, 0) + i * tile_rows
    valid = row < n_rows                               # (TR, 1) bool

    # Neutralize garbage logits in OOB rows before any reduction/exp.
    x = jnp.where(valid, x, 0.0)

    cls = jax.lax.broadcasted_iota(jnp.int32, x.shape, 1)
    onehot = (cls == t).astype(jnp.float32)            # (TR, C)

    xmax = jnp.max(x, axis=-1, keepdims=True)          # (TR, 1)
    z = x - xmax
    lse = jnp.log(jnp.sum(jnp.exp(z), axis=-1, keepdims=True))
    picked = jnp.sum(z * onehot, axis=-1, keepdims=True)
    nll = lse - picked                                  # (TR, 1)

    row_w = jnp.sum(onehot * w, axis=-1, keepdims=True)
    row_w = jnp.where(valid, row_w, 0.0)                # zero weight for OOB rows

    numer = jnp.sum(nll * row_w)                        # scalar partial
    denom = jnp.sum(row_w)                              # scalar partial

    # Lane-dense (8,128) write per tile; wrapper reads element [0, 0].
    numer_ref[0] = jnp.full((8, 128), numer, dtype=jnp.float32)
    denom_ref[0] = jnp.full((8, 128), denom, dtype=jnp.float32)


def frames_classif_loss(y_pred, y_true, class_weights=None, *, tile_rows=2048):
    """y_pred: (B, T, C) logits (f32/bf16); y_true: (B, T) int; class_weights: (C,) or None."""
    B, T, C = y_pred.shape
    N = B * T

    logits = y_pred.reshape(N, C)                       # native dtype, no padding
    targets = y_true.reshape(N, 1).astype(jnp.int32)
    if class_weights is None:
        class_weights = jnp.ones((C,), dtype=jnp.float32)
    w = class_weights.reshape(1, C).astype(jnp.float32)

    # Pick the row tile: large for throughput, VMEM-capped, 8-aligned
    # (or equal to the full row count for tiny inputs).
    tr = int(tile_rows)
    bytes_per_row = C * jnp.dtype(logits.dtype).itemsize
    max_rows_by_vmem = max(8, (4 * 1024 * 1024) // int(bytes_per_row))
    tr = min(tr, max_rows_by_vmem)
    if N <= tr:
        tr = N                                          # block == full dim is legal
    else:
        tr = max(8, (tr // 8) * 8)
    num_tiles = -(-N // tr)

    kernel = functools.partial(_ce_partial_kernel, n_rows=N, tile_rows=tr)

    numer_out, denom_out = pl.pallas_call(
        kernel,
        out_shape=(
            jax.ShapeDtypeStruct((num_tiles, 8, 128), jnp.float32),
            jax.ShapeDtypeStruct((num_tiles, 8, 128), jnp.float32),
        ),
        grid=(num_tiles,),
        in_specs=[
            pl.BlockSpec((tr, C), lambda i: (i, 0)),    # logits tile
            pl.BlockSpec((tr, 1), lambda i: (i, 0)),    # targets tile
            pl.BlockSpec((1, C), lambda i: (0, 0)),     # class weights (constant block)
        ],
        out_specs=(
            pl.BlockSpec((1, 8, 128), lambda i: (i, 0, 0)),
            pl.BlockSpec((1, 8, 128), lambda i: (i, 0, 0)),
        ),
        compiler_params=pltpu.CompilerParams(
            dimension_semantics=("parallel",)),
    )(logits, targets, w)

    numer = jnp.sum(numer_out[:, 0, 0])
    denom = jnp.sum(denom_out[:, 0, 0])
    # Final weighted-mean divide (matches nn.CrossEntropyLoss reduction='mean').
    return {"loss": numer / denom}


def _reference_loss(y_pred, y_true, class_weights):
    B, T, C = y_pred.shape
    logits = y_pred.reshape(B * T, C).astype(jnp.float32)
    targets = y_true.reshape(B * T)
    lse = jax.scipy.special.logsumexp(logits, axis=-1)
    picked = jnp.take_along_axis(logits, targets[:, None], axis=-1)[:, 0]
    nll = lse - picked
    w = class_weights[targets]
    return jnp.sum(nll * w) / jnp.sum(w)


if __name__ == "__main__":
    B, T, C = 2, 8, 16

    key = jax.random.PRNGKey(0)
    k1, k2 = jax.random.split(key)
    y_pred = jax.random.normal(k1, (B, T, C), dtype=jnp.float32)
    y_true = jax.random.randint(k2, (B, T), 0, C, dtype=jnp.int32)

    # Deterministic class weights, mimicking __init__(class_freq):
    # class_freq = {k: k + 1}  ->  weight[k] = 1 / (k + 1)
    class_weights = 1.0 / (jnp.arange(C, dtype=jnp.float32) + 1.0)

    out = frames_classif_loss(y_pred, y_true, class_weights)
    loss = jax.block_until_ready(out["loss"])
    ref = jax.block_until_ready(_reference_loss(y_pred, y_true, class_weights))
    assert np.isfinite(float(loss))
    np.testing.assert_allclose(float(loss), float(ref), rtol=1e-5, atol=1e-5)

    # Extra sanity check: multi-tile grid with a ragged last block (N=15, tile=8)
    # to exercise the in-kernel row masking / parallel partial outputs.
    B2, T2 = 3, 5
    k3, k4 = jax.random.split(k2)
    y_pred2 = jax.random.normal(k3, (B2, T2, C), dtype=jnp.float32)
    y_true2 = jax.random.randint(k4, (B2, T2), 0, C, dtype=jnp.int32)
    out2 = frames_classif_loss(y_pred2, y_true2, class_weights, tile_rows=8)
    loss2 = jax.block_until_ready(out2["loss"])
    ref2 = jax.block_until_ready(_reference_loss(y_pred2, y_true2, class_weights))
    np.testing.assert_allclose(float(loss2), float(ref2), rtol=1e-5, atol=1e-5)

    print("KERNEL_OK")
</pallas_src>

<mosaic_0001>
module attributes {stable_mosaic.version = 11 : i64} {
  func.func @_ce_partial_kernel(%arg0: i32, %arg1: memref<16x16xf32, #tpu.memory_space<vmem>>, %arg2: memref<16x1xi32, #tpu.memory_space<vmem>>, %arg3: memref<1x16xf32, #tpu.memory_space<vmem>>, %arg4: memref<1x8x128xf32, #tpu.memory_space<vmem>>, %arg5: memref<1x8x128xf32, #tpu.memory_space<vmem>>) attributes {dimension_semantics = [#tpu.dimension_semantics<parallel>], iteration_bounds = array<i64: 1>, scalar_prefetch = 0 : i64, scratch_operands = 0 : i64, tpu.core_type = #tpu.core_type<tc>, window_params = [{transform_indices = @transform_0, window_bounds = array<i64: 16, 16>}, {transform_indices = @transform_1, window_bounds = array<i64: 16, 1>}, {pipeline_mode = #tpu.pipeline_mode<synchronous>, transform_indices = @transform_2, window_bounds = array<i64: 1, 16>}, {transform_indices = @transform_3, window_bounds = array<i64: 1, 8, 128>}, {transform_indices = @transform_4, window_bounds = array<i64: 1, 8, 128>}]} {
    %c0 = arith.constant 0 : index
    %c0_0 = arith.constant 0 : index
    %0 = vector.load %arg1[%c0, %c0_0] : memref<16x16xf32, #tpu.memory_space<vmem>>, vector<16x16xf32>
    %c0_1 = arith.constant 0 : index
    %c0_2 = arith.constant 0 : index
    %1 = vector.load %arg2[%c0_1, %c0_2] : memref<16x1xi32, #tpu.memory_space<vmem>>, vector<16x1xi32>
    %c0_3 = arith.constant 0 : index
    %c0_4 = arith.constant 0 : index
    %2 = vector.load %arg3[%c0_3, %c0_4] : memref<1x16xf32, #tpu.memory_space<vmem>>, vector<1x16xf32>
    %3 = tpu.iota {dimensions = array<i32: 0>} : vector<16x1xi32>
    %c16_i32 = arith.constant 16 : i32
    %4 = arith.muli %arg0, %c16_i32 : i32
    %5 = vector.broadcast %4 : i32 to vector<16x1xi32>
    %6 = arith.addi %3, %5 : vector<16x1xi32>
    %c16_i32_5 = arith.constant 16 : i32
    %7 = vector.broadcast %c16_i32_5 : i32 to vector<16x1xi32>
    %8 = arith.cmpi slt, %6, %7 : vector<16x1xi32>
    %cst = arith.constant 0.000000e+00 : f32
    %9 = vector.shape_cast %8 : vector<16x1xi1> to vector<16x1xi1>
    %10 = vector.broadcast %9 : vector<16x1xi1> to vector<16x16xi1>
    %11 = vector.broadcast %cst : f32 to vector<16x16xf32>
    %12 = arith.select %10, %0, %11 : vector<16x16xi1>, vector<16x16xf32>
    %13 = tpu.iota {dimensions = array<i32: 1>} : vector<16x16xi32>
    %14 = vector.broadcast %1 : vector<16x1xi32> to vector<16x16xi32>
    %15 = arith.cmpi eq, %13, %14 : vector<16x16xi32>
    %16 = arith.extui %15 : vector<16x16xi1> to vector<16x16xi32>
    %17 = arith.sitofp %16 : vector<16x16xi32> to vector<16x16xf32>
    %cst_6 = arith.constant dense<0xFF800000> : vector<16xf32>
    %18 = vector.multi_reduction <maximumf>, %12, %cst_6 [1] : vector<16x16xf32> to vector<16xf32>
    %19 = vector.shape_cast %18 : vector<16xf32> to vector<16x1xf32>
    %20 = vector.broadcast %19 : vector<16x1xf32> to vector<16x16xf32>
    %21 = arith.subf %12, %20 : vector<16x16xf32>
    %22 = math.exp %21 : vector<16x16xf32>
    %cst_7 = arith.constant dense<0.000000e+00> : vector<16xf32>
    %23 = vector.multi_reduction <add>, %22, %cst_7 [1] : vector<16x16xf32> to vector<16xf32>
    %24 = vector.shape_cast %23 : vector<16xf32> to vector<16x1xf32>
    %25 = math.log %24 : vector<16x1xf32>
    %26 = arith.mulf %21, %17 : vector<16x16xf32>
    %cst_8 = arith.constant dense<0.000000e+00> : vector<16xf32>
    %27 = vector.multi_reduction <add>, %26, %cst_8 [1] : vector<16x16xf32> to vector<16xf32>
    %28 = vector.shape_cast %27 : vector<16xf32> to vector<16x1xf32>
    %29 = arith.subf %25, %28 : vector<16x1xf32>
    %30 = vector.broadcast %2 : vector<1x16xf32> to vector<16x16xf32>
    %31 = arith.mulf %17, %30 : vector<16x16xf32>
    %cst_9 = arith.constant dense<0.000000e+00> : vector<16xf32>
    %32 = vector.multi_reduction <add>, %31, %cst_9 [1] : vector<16x16xf32> to vector<16xf32>
    %33 = vector.shape_cast %32 : vector<16xf32> to vector<16x1xf32>
    %cst_10 = arith.constant 0.000000e+00 : f32
    %34 = vector.broadcast %cst_10 : f32 to vector<16x1xf32>
    %35 = arith.select %8, %33, %34 : vector<16x1xi1>, vector<16x1xf32>
    %36 = arith.mulf %29, %35 : vector<16x1xf32>
    %37 = vector.shape_cast %36 : vector<16x1xf32> to vector<1x16x1xf32>
    %cst_11 = arith.constant dense<0.000000e+00> : vector<1xf32>
    %38 = vector.multi_reduction <add>, %37, %cst_11 [1, 2] : vector<1x16x1xf32> to vector<1xf32>
    %39 = vector.shape_cast %38 : vector<1xf32> to vector<1x1x1xf32>
    %40 = vector.extract %39[0, 0, 0] : f32 from vector<1x1x1xf32>
    %41 = vector.shape_cast %35 : vector<16x1xf32> to vector<1x16x1xf32>
    %cst_12 = arith.constant dense<0.000000e+00> : vector<1xf32>
    %42 = vector.multi_reduction <add>, %41, %cst_12 [1, 2] : vector<1x16x1xf32> to vector<1xf32>
    %43 = vector.shape_cast %42 : vector<1xf32> to vector<1x1x1xf32>
    %44 = vector.extract %43[0, 0, 0] : f32 from vector<1x1x1xf32>
    %45 = vector.broadcast %40 : f32 to vector<8x128xf32>
    %c0_13 = arith.constant 0 : index
    %c0_14 = arith.constant 0 : index
    %c0_15 = arith.constant 0 : index
    %46 = vector.load %arg4[%c0_13, %c0_14, %c0_15] : memref<1x8x128xf32, #tpu.memory_space<vmem>>, vector<1x8x128xf32>
    %47 = vector.shape_cast %46 : vector<1x8x128xf32> to vector<8x128xf32>
    %48 = vector.shape_cast %45 : vector<8x128xf32> to vector<1x8x128xf32>
    tpu.vector_store %arg4[%c0_13, %c0_14, %c0_15], %48 {strides = array<i32>} : memref<1x8x128xf32, #tpu.memory_space<vmem>>, vector<1x8x128xf32>,
    %49 = vector.broadcast %44 : f32 to vector<8x128xf32>
    %c0_16 = arith.constant 0 : index
    %c0_17 = arith.constant 0 : index
    %c0_18 = arith.constant 0 : index
    %50 = vector.load %arg5[%c0_16, %c0_17, %c0_18] : memref<1x8x128xf32, #tpu.memory_space<vmem>>, vector<1x8x128xf32>
    %51 = vector.shape_cast %50 : vector<1x8x128xf32> to vector<8x128xf32>
    %52 = vector.shape_cast %49 : vector<8x128xf32> to vector<1x8x128xf32>
    tpu.vector_store %arg5[%c0_16, %c0_17, %c0_18], %52 {strides = array<i32>} : memref<1x8x128xf32, #tpu.memory_space<vmem>>, vector<1x8x128xf32>,
    return
  }
  func.func @transform_0(%arg0: i32) -> (i32, i32) {
    %c0_i32 = arith.constant 0 : i32
    %c0_i32_0 = arith.constant 0 : i32
    return %arg0, %c0_i32 : i32, i32
  }
  func.func @transform_1(%arg0: i32) -> (i32, i32) {
    %c0_i32 = arith.constant 0 : i32
    %c0_i32_0 = arith.constant 0 : i32
    return %arg0, %c0_i32 : i32, i32
  }
  func.func @transform_2(%arg0: i32) -> (i32, i32) {
    %c0_i32 = arith.constant 0 : i32
    %c0_i32_0 = arith.constant 0 : i32
    %c0_i32_1 = arith.constant 0 : i32
    return %c0_i32, %c0_i32_0 : i32, i32
  }
  func.func @transform_3(%arg0: i32) -> (i32, i32, i32) {
    %c0_i32 = arith.constant 0 : i32
    %c0_i32_0 = arith.constant 0 : i32
    %c0_i32_1 = arith.constant 0 : i32
    return %arg0, %c0_i32, %c0_i32_0 : i32, i32, i32
  }
  func.func @transform_4(%arg0: i32) -> (i32, i32, i32) {
    %c0_i32 = arith.constant 0 : i32
    %c0_i32_0 = arith.constant 0 : i32
    %c0_i32_1 = arith.constant 0 : i32
    return %arg0, %c0_i32, %c0_i32_0 : i32, i32, i32
  }
}

</mosaic_0001>

<llo_original>
// kernel: tpu_custom_call.1
$region0: #{tpu_custom_call.1}
  #allocation0 [shape = 'u32[]', space=smem, size = 0x4, offset = 0x4, fixed_abs, tag = 'smem constant byte address 0x4 - core index']
  #allocation1 [shape = 'u32[72,128]{1,0:T(1,128)}', space=vmem, size = 0x9000, scoped, tag = 'internal scratch']
  %s0 = inlined_call_operand.vmem [shape: f32[16,16], index: 0, kind: input, shape index: {}]
  %s1 = inlined_call_operand.vmem [shape: s32[16,1], index: 1, kind: input, shape index: {}]
  %s2 = inlined_call_operand.vmem [shape: f32[1,16], index: 2, kind: input, shape index: {}]
  %s3 = inlined_call_operand.hbm [shape: f32[1,8,128], index: 3, kind: output, shape index: {0}]
  %s4 = inlined_call_operand.hbm [shape: f32[1,8,128], index: 4, kind: output, shape index: {1}]
  %5 = xla_tuple %s3, %s4
  %s6 = sld [smem:[#allocation0]]
  $region30: #{tpu_custom_call.1} parent=0
    _
  %s8 = ssub.s32 1, %s6
  %s9 = scalar_select 0, %s8, %s6
  $region1: #{tpu_custom_call.1} parent=0
    #allocation2 [shape = 'u8[4096]{0}', space=vmem, size = 0x1000, scoped, tag = 'output window, operand 0, single buffered']
    #allocation3 [shape = 's32[1]{0}', space=sflag, size = 0x4, scoped, tag = 'scoped memory for tpu_custom_call.1']
    #allocation4 [shape = 'u8[4096]{0}', space=vmem, size = 0x1000, scoped, tag = 'output window, operand 1, single buffered']
    #allocation5 [shape = 's32[1]{0}', space=sflag, size = 0x4, scoped, tag = 'scoped memory for tpu_custom_call.1']
    %10 = vsyncpa [#allocation3], 0
    %11 = vsyncpa [#allocation5], 0
    // Predicated region
    $region2: #{tpu_custom_call.1} parent=1 // pred_check
      _
    $region3: #{tpu_custom_call.1} parent=1 // pred_check_branch
      %13 = sbr.rel (0) target = $region5
    $region4: #{tpu_custom_call.1} parent=1 // pred_region
      _
    $region5: #{tpu_custom_call.1} parent=1 // pred_fallthru
      _
    // Predicated region
    $region6: #{tpu_custom_call.1} parent=1 // pred_check
      _
    $region7: #{tpu_custom_call.1} parent=1 // pred_check_branch
      %15 = sbr.rel (0) target = $region9
    $region8: #{tpu_custom_call.1} parent=1 // pred_region
      _
    $region9: #{tpu_custom_call.1} parent=1 // pred_fallthru
      _
    // Predicated region
    $region10: #{tpu_custom_call.1} parent=1 // pred_check
      _
    $region11: #{tpu_custom_call.1} parent=1 // pred_check_branch
      %17 = sbr.rel (0) target = $region13
    $region12: #{tpu_custom_call.1} parent=1 // pred_region
      _
    $region13: #{tpu_custom_call.1} parent=1 // pred_fallthru
      _
    %v18 = vld [vmem:[%s0] sm:$0xff]
    %v19 = vld [vmem:[%s0 + $0x8] sm:$0xff]
    %v20 = vld [vmem:[%s1] sm:$0xff]
    %v21 = vld [vmem:[%s1 + $0x8] sm:$0xff]
    %v22 = vld [vmem:[%s2] sm:$0x1]
    %v23 = vlaneseq
    %v24 = vshrl.u32 %v23, 7
    %v25 = vadd.s32 %v24, 8
    %s26 = smul.u32 0, 16
    %v27 = vstv %s26
    %v28 = vadd.s32 %v24, %v27
    %v29 = vadd.s32 %v25, %v27
    %vm30 = vcmp.lt.s32.totalorder %v28, 16
    %vm31 = vcmp.lt.s32.totalorder %v29, 16
    %v32 = vsel %vm30, 1, 0
    %v33 = vsel %vm31, 1, 0
    %vm34 = vcmp.eq.s32.totalorder %v32, 1
    %vm35 = vcmp.eq.s32.totalorder %v33, 1
    %v36 = vsel %vm34, %v18, 0.0
    %v37 = vsel %vm35, %v19, 0.0
    %v38 = vlaneseq
    %v39 = vand.u32 %v38, 127
    %40 = vset.pattern.permute.xlu0 0
    %41 = vperm.xlu0 %40, %v20
    %v42 = vpop.permute.xlu0 %41
    %43 = vset.pattern.permute.xlu0 0
    %44 = vperm.xlu0 %43, %v21
    %v45 = vpop.permute.xlu0 %44
    %vm46 = vcmp.eq.s32.totalorder %v39, %v42
    %vm47 = vcmp.eq.s32.totalorder %v39, %v45
    %v48 = vsel %vm46, 1, 0
    %v49 = vsel %vm47, 1, 0
    %v50 = vcvt.s32.f32 %v48
    %v51 = vcvt.s32.f32 %v49
    %vm52 = vcmask 130048
    %v53 = vsel %vm52, %v36, -inf
    %54 = vmax.xlane.f32.xlu0 %v53
    %v55 = vpop.xlane.xlu0 %54
    %v56 = vsel %vm52, %v37, -inf
    %57 = vmax.xlane.f32.xlu0 %v56
    %v58 = vpop.xlane.xlu0 %57
    %v59 = vsub.f32 %v36, %v55
    %v60 = vsub.f32 %v37, %v58
    %v61 = vmul.f32 %v59, 1.442695
    %v62 = vpow.pop %v61
    %v63 = vmul.f32 %v60, 1.442695
    %v64 = vpow.pop %v63
    %v65 = vsel %vm52, %v62, 0.0
    %66 = vadd.xlane.f32.xlu0 %v65
    %v67 = vpop.xlane.xlu0 %66
    %v68 = vsel %vm52, %v64, 0.0
    %69 = vadd.xlane.f32.xlu0 %v68
    %v70 = vpop.xlane.xlu0 %69
    %v71 = vlog2.pop %v67
    %v72 = vmul.f32 %v71, 0.6931472
    %v73 = vlog2.pop %v70
    %v74 = vmul.f32 %v73, 0.6931472
    %v75 = vmul.f32 %v59, %v50
    %v76 = vmul.f32 %v60, %v51
    %v77 = vsel %vm52, %v75, 0.0
    %78 = vadd.xlane.f32.xlu0 %v77
    %v79 = vpop.xlane.xlu0 %78
    %v80 = vsel %vm52, %v76, 0.0
    %81 = vadd.xlane.f32.xlu0 %v80
    %v82 = vpop.xlane.xlu0 %81
    %v83 = vsub.f32 %v72, %v79
    %v84 = vsub.f32 %v74, %v82
    %v86 = vperm.slane %v22, 0
    %v88 = vmul.f32 %v50, %v86
    %v89 = vmul.f32 %v51, %v86
    %v90 = vsel %vm52, %v88, 0.0
    %91 = vadd.xlane.f32.xlu0 %v90
    %v92 = vpop.xlane.xlu0 %91
    %v93 = vsel %vm52, %v89, 0.0
    %94 = vadd.xlane.f32.xlu0 %v93
    %v95 = vpop.xlane.xlu0 %94
    %v96 = vsel %vm30, %v92, 0.0
    %v97 = vsel %vm31, %v95, 0.0
    %v98 = vmul.f32 %v83, %v96
    %v99 = vmul.f32 %v84, %v97
    %vm100 = vcmask 7168
    %v101 = vsel %vm100, %v98, 0.0
    %v102 = vsel %vm100, %v99, 0.0
    %v103 = vadd.f32 %v101, %v102
    %104 = vadd.xlane.f32.xlu0 %v103
    %v105 = vpop.xlane.xlu0 %104
    %v106 = vrot.slane %v105, 4
    %v107 = vadd.f32 %v105, %v106
    %v108 = vrot.slane %v107, 2
    %v109 = vadd.f32 %v107, %v108
    %v110 = vrot.slane %v109, 1
    %v111 = vadd.f32 %v109, %v110
    %s112 = vtos %v111
    %v113 = vsel %vm100, %v96, 0.0
    %v114 = vsel %vm100, %v97, 0.0
    %v115 = vadd.f32 %v113, %v114
    %116 = vadd.xlane.f32.xlu0 %v115
    %v117 = vpop.xlane.xlu0 %116
    %v118 = vrot.slane %v117, 4
    %v119 = vadd.f32 %v117, %v118
    %v120 = vrot.slane %v119, 2
    %v121 = vadd.f32 %v119, %v120
    %v122 = vrot.slane %v121, 1
    %v123 = vadd.f32 %v121, %v122
    %s124 = vtos %v123
    %v125 = vstv %s112
    %126 = vst [vmem:[#allocation2] sm:$0xff] %v125
    %v127 = vstv %s124
    %128 = vst [vmem:[#allocation4] sm:$0xff] %v127
    // Predicated region
    $region14: #{tpu_custom_call.1} parent=1 // pred_check
      _
    $region15: #{tpu_custom_call.1} parent=1 // pred_check_branch
      %130 = sbr.rel (0) target = $region17
    $region16: #{tpu_custom_call.1} parent=1 // pred_region
      %132 = vsyncadd [#allocation3], 0
      %s134 = sshll.u32 [#allocation2], 4
      %s135 = int_to_ptr.vmem [resolvable:$true] %s134
      %s136 = sshll.u32 %s3, 4
      %s137 = int_to_ptr.hbm [resolvable:$true] %s136
      %139 = dma.vmem_to_hbm [thread:$0]  %s135, 128, %s137, [#allocation3]
    $region17: #{tpu_custom_call.1} parent=1 // pred_fallthru
      _
    // Predicated region
    $region18: #{tpu_custom_call.1} parent=1 // pred_check
      _
    $region19: #{tpu_custom_call.1} parent=1 // pred_check_branch
      %141 = sbr.rel (0) target = $region21
    $region20: #{tpu_custom_call.1} parent=1 // pred_region
      %143 = vsyncadd [#allocation5], 0
      %s145 = sshll.u32 [#allocation4], 4
      %s146 = int_to_ptr.vmem [resolvable:$true] %s145
      %s147 = sshll.u32 %s4, 4
      %s148 = int_to_ptr.hbm [resolvable:$true] %s147
      %150 = dma.vmem_to_hbm [thread:$0]  %s146, 128, %s148, [#allocation5]
    $region21: #{tpu_custom_call.1} parent=1 // pred_fallthru
      _
    // Predicated region
    $region22: #{tpu_custom_call.1} parent=1 // pred_check
      _
    $region23: #{tpu_custom_call.1} parent=1 // pred_check_branch
      %152 = sbr.rel (0) target = $region25
    $region24: #{tpu_custom_call.1} parent=1 // pred_region
      %154 = dma.done [#allocation3], 128
    $region25: #{tpu_custom_call.1} parent=1 // pred_fallthru
      _
    // Predicated region
    $region26: #{tpu_custom_call.1} parent=1 // pred_check
      _
    $region27: #{tpu_custom_call.1} parent=1 // pred_check_branch
      %156 = sbr.rel (0) target = $region29
    $region28: #{tpu_custom_call.1} parent=1 // pred_region
      %158 = dma.done [#allocation5], 128
    $region29: #{tpu_custom_call.1} parent=1 // pred_fallthru
      _
    %159 = vsyncpa [#allocation3], 1
    %160 = vsyncpa [#allocation5], 1

</llo_original>
